<compile_context>
chip_gen: v6e
topology: v6e:2x2x1
jax: 0.10.0
libtpu: 0.0.40
codegen_flags: <defaults>
</compile_context>

<pallas_src>
import functools

import jax
import jax.numpy as jnp
from jax.experimental import pallas as pl
from jax.experimental.pallas import tpu as pltpu


# ----------------------------- slab layout ---------------------------------

def _rup(n, m=8):
    return ((n + m - 1) // m) * m


def _slab_layout(d_in, h, d_out):
    """Row offsets of each parameter inside the packed f32 slab."""
    g = 4 * h
    width = _rup(max(g, d_out, h), 128)           # lane-padded to 128 multiple
    r_w1 = 0
    r_wih = r_w1 + _rup(d_in)
    r_whh = r_wih + _rup(h)
    r_w2 = r_whh + _rup(h)
    r_bias = r_w2 + _rup(h)                       # 3 bias rows live here
    rows = r_bias + 8
    return (r_w1, r_wih, r_whh, r_w2, r_bias), rows, width


def prepare_params(params):
    """One-time param transform: gate pre-scaling + bias combine + packing."""
    w1, b1, wih, whh, bih, bhh, w2, b2 = params
    d_in, h = w1.shape
    d_out = w2.shape[1]
    g = 4 * h
    (r_w1, r_wih, r_whh, r_w2, r_bias), rows, width = _slab_layout(d_in, h, d_out)

    # tanh(a) == 2*sigmoid(2a) - 1: pre-scale the g-gate columns by 2 so the
    # kernel can use one fused sigmoid over the whole (B, 4H) gate tile.
    gate_scale = jnp.concatenate(
        [jnp.ones((2 * h,), jnp.float32),
         jnp.full((h,), 2.0, jnp.float32),
         jnp.ones((h,), jnp.float32)])[None, :]                   # (1, 4H)
    wih_s = wih * gate_scale
    whh_s = whh * gate_scale
    bg = (bih + bhh) * gate_scale

    slab = jnp.zeros((rows, width), jnp.float32)
    slab = slab.at[r_w1:r_w1 + d_in, 0:h].set(w1)
    slab = slab.at[r_wih:r_wih + h, 0:g].set(wih_s)
    slab = slab.at[r_whh:r_whh + h, 0:g].set(whh_s)
    slab = slab.at[r_w2:r_w2 + h, 0:d_out].set(w2)
    slab = slab.at[r_bias, 0:h].set(b1[0])
    slab = slab.at[r_bias + 1, 0:g].set(bg[0])
    slab = slab.at[r_bias + 2, 0:d_out].set(b2[0])
    return slab


# ------------------------------- kernel ------------------------------------

def pollution_kernel(x_ref, p_ref, out_ref, *, B, T, D_in, H, D_out, offs):
    r_w1, r_wih, r_whh, r_w2, r_bias = offs
    G = 4 * H

    # Carve parameters out of the packed slab (static slices, loaded once).
    # Weights -> bf16 for the native MXU path; biases stay f32.
    w1 = p_ref[r_w1:r_w1 + D_in, 0:H].astype(jnp.bfloat16)
    wih = p_ref[r_wih:r_wih + H, 0:G].astype(jnp.bfloat16)
    whh = p_ref[r_whh:r_whh + H, 0:G].astype(jnp.bfloat16)
    w2 = p_ref[r_w2:r_w2 + H, 0:D_out].astype(jnp.bfloat16)
    b1 = p_ref[r_bias:r_bias + 1, 0:H]                      # (1, H)
    bg = p_ref[r_bias + 1:r_bias + 2, 0:G]                  # (1, 4H)
    b2 = p_ref[r_bias + 2:r_bias + 3, 0:D_out]              # (1, D_out)

    x = x_ref[...].astype(jnp.bfloat16)                     # (B*T, D_in)

    # --- hoisted, non-recurrent work: one MXU pass over all timesteps ---
    z = jnp.maximum(
        jnp.dot(x, w1, preferred_element_type=jnp.float32) + b1, 0.0)
    gx = (jnp.dot(z.astype(jnp.bfloat16), wih,
                  preferred_element_type=jnp.float32) + bg)  # (B*T, 4H)
    gx = gx.reshape(B, T, G)            # layout-preserving; [:, t, :] below is
                                        # a cheap static sublane select

    # --- serial recurrence: only h @ W_hh remains on the critical path ---
    h = jnp.zeros((B, H), jnp.float32)
    c = jnp.zeros((B, H), jnp.float32)
    for t in range(T):                  # tiny fixed T -> full unroll
        gates = gx[:, t, :] + jnp.dot(h.astype(jnp.bfloat16), whh,
                                      preferred_element_type=jnp.float32)
        s = jax.nn.sigmoid(gates)       # one fused EUP pass over the tile
        i_g = s[:, 0 * H:1 * H]
        f_g = s[:, 1 * H:2 * H]
        g_g = 2.0 * s[:, 2 * H:3 * H] - 1.0   # == tanh of the unscaled pre-act
        o_g = s[:, 3 * H:4 * H]
        c = f_g * c + i_g * g_g
        h = o_g * jnp.tanh(c)

    # --- fc2 on ReLU(h_T) ---
    out_ref[...] = (
        jnp.dot(jnp.maximum(h, 0.0).astype(jnp.bfloat16), w2,
                preferred_element_type=jnp.float32) + b2)


# ------------------------------- wrapper ------------------------------------

def pollution_forward(x, slab, *, input_size, output_size):
    B, T, D_in = x.shape
    H = (input_size + output_size) // 2
    D_out = output_size
    offs, rows, width = _slab_layout(D_in, H, D_out)
    assert slab.shape == (rows, width)

    # Batch-major flatten is a pure (free) reshape — no transpose on dispatch.
    x_flat = x.reshape(B * T, D_in)

    kernel = functools.partial(pollution_kernel, B=B, T=T, D_in=D_in, H=H,
                               D_out=D_out, offs=offs)
    vmem = lambda: pl.BlockSpec(memory_space=pltpu.MemorySpace.VMEM)

    flops = 2 * (B * T * D_in * H + B * T * H * 4 * H
                 + T * B * H * 4 * H + B * H * D_out)
    transcendentals = T * B * 5 * H
    bytes_accessed = 4 * (x_flat.size + slab.size + B * D_out)

    return pl.pallas_call(
        kernel,
        out_shape=jax.ShapeDtypeStruct((B, D_out), jnp.float32),
        in_specs=[vmem(), vmem()],
        out_specs=vmem(),
        cost_estimate=pl.CostEstimate(flops=flops,
                                      transcendentals=transcendentals,
                                      bytes_accessed=bytes_accessed),
    )(x_flat, slab)


# --------------------------- params / reference -----------------------------

def make_params(key, input_size, output_size):
    hidden = (input_size + output_size) // 2
    ks = jax.random.split(key, 8)
    s = 0.1
    w1 = s * jax.random.normal(ks[0], (input_size, hidden), jnp.float32)
    b1 = s * jax.random.normal(ks[1], (1, hidden), jnp.float32)
    wih = s * jax.random.normal(ks[2], (hidden, 4 * hidden), jnp.float32)
    whh = s * jax.random.normal(ks[3], (hidden, 4 * hidden), jnp.float32)
    bih = s * jax.random.normal(ks[4], (1, 4 * hidden), jnp.float32)
    bhh = s * jax.random.normal(ks[5], (1, 4 * hidden), jnp.float32)
    w2 = s * jax.random.normal(ks[6], (hidden, output_size), jnp.float32)
    b2 = s * jax.random.normal(ks[7], (1, output_size), jnp.float32)
    return (w1, b1, wih, whh, bih, bhh, w2, b2)


def reference_forward(x, params):
    """Pure-JAX f32 reference matching PyTorch semantics (for validation)."""
    w1, b1, wih, whh, bih, bhh, w2, b2 = params
    B, T, _ = x.shape
    H = w1.shape[1]
    z = jnp.maximum(jnp.einsum("btd,dh->bth", x, w1) + b1[None], 0.0)

    def cell(carry, z_t):
        h, c = carry
        gates = z_t @ wih + h @ whh + bih + bhh
        i = jax.nn.sigmoid(gates[:, 0 * H:1 * H])
        f = jax.nn.sigmoid(gates[:, 1 * H:2 * H])
        g = jnp.tanh(gates[:, 2 * H:3 * H])
        o = jax.nn.sigmoid(gates[:, 3 * H:4 * H])
        c = f * c + i * g
        h = o * jnp.tanh(c)
        return (h, c), None

    (h, _), _ = jax.lax.scan(cell, (jnp.zeros((B, H)), jnp.zeros((B, H))),
                             jnp.swapaxes(z, 0, 1))
    return jnp.maximum(h, 0.0) @ w2 + b2


if __name__ == "__main__":
    B, T = 2, 8
    input_size, output_size = 16, 16        # hidden = (16 + 16) // 2 = 16
    key = jax.random.PRNGKey(0)
    kx, kp = jax.random.split(key)
    x = jax.random.normal(kx, (B, T, input_size), jnp.float32)
    params = make_params(kp, input_size, output_size)

    # One-time param transform (out of the per-call path).
    slab = jax.block_until_ready(prepare_params(params))

    fwd = jax.jit(functools.partial(pollution_forward,
                                    input_size=input_size,
                                    output_size=output_size))
    out = jax.block_until_ready(fwd(x, slab))

    ref = jax.block_until_ready(reference_forward(x, params))
    assert out.shape == (B, output_size)
    # bf16 matmul inputs in the kernel vs f32 reference -> relaxed tolerance.
    assert jnp.allclose(out, ref, atol=2e-2, rtol=2e-2), "mismatch vs JAX reference"
    print("KERNEL_OK")
</pallas_src>

<mosaic_0001>
module attributes {stable_mosaic.version = 11 : i64} {
  func.func @pollution_kernel(%arg0: memref<16x16xf32, #tpu.memory_space<vmem>>, %arg1: memref<72x128xf32, #tpu.memory_space<vmem>>, %arg2: memref<2x16xf32, #tpu.memory_space<vmem>>) attributes {dimension_semantics = [], scalar_prefetch = 0 : i64, scratch_operands = 0 : i64, tpu.core_type = #tpu.core_type<tc>} {
    %c0 = arith.constant 0 : index
    %c0_0 = arith.constant 0 : index
    %0 = vector.load %arg1[%c0, %c0_0] : memref<72x128xf32, #tpu.memory_space<vmem>>, vector<16x16xf32>
    %1 = arith.truncf %0 : vector<16x16xf32> to vector<16x16xbf16>
    %c16 = arith.constant 16 : index
    %c0_1 = arith.constant 0 : index
    %2 = vector.load %arg1[%c16, %c0_1] : memref<72x128xf32, #tpu.memory_space<vmem>>, vector<16x64xf32>
    %3 = arith.truncf %2 : vector<16x64xf32> to vector<16x64xbf16>
    %c32 = arith.constant 32 : index
    %c0_2 = arith.constant 0 : index
    %4 = vector.load %arg1[%c32, %c0_2] : memref<72x128xf32, #tpu.memory_space<vmem>>, vector<16x64xf32>
    %5 = arith.truncf %4 : vector<16x64xf32> to vector<16x64xbf16>
    %c48 = arith.constant 48 : index
    %c0_3 = arith.constant 0 : index
    %6 = vector.load %arg1[%c48, %c0_3] : memref<72x128xf32, #tpu.memory_space<vmem>>, vector<16x16xf32>
    %7 = arith.truncf %6 : vector<16x16xf32> to vector<16x16xbf16>
    %c64 = arith.constant 64 : index
    %c0_4 = arith.constant 0 : index
    %8 = vector.load %arg1[%c64, %c0_4] : memref<72x128xf32, #tpu.memory_space<vmem>>, vector<1x16xf32>
    %c65 = arith.constant 65 : index
    %c0_5 = arith.constant 0 : index
    %9 = vector.load %arg1[%c65, %c0_5] : memref<72x128xf32, #tpu.memory_space<vmem>>, vector<1x64xf32>
    %c66 = arith.constant 66 : index
    %c0_6 = arith.constant 0 : index
    %10 = vector.load %arg1[%c66, %c0_6] : memref<72x128xf32, #tpu.memory_space<vmem>>, vector<1x16xf32>
    %c0_7 = arith.constant 0 : index
    %c0_8 = arith.constant 0 : index
    %11 = vector.load %arg0[%c0_7, %c0_8] : memref<16x16xf32, #tpu.memory_space<vmem>>, vector<16x16xf32>
    %12 = arith.truncf %11 : vector<16x16xf32> to vector<16x16xbf16>
    %cst = arith.constant dense<0.000000e+00> : vector<16x16xf32>
    %13 = tpu.matmul %12, %1, %cst {dimension_numbers = #tpu.dot_dimension_numbers<[1], [0], [0], [1], [0, 0, 1, 1], [], []>} : vector<16x16xbf16>, vector<16x16xbf16>, vector<16x16xf32> -> vector<16x16xf32>
    %14 = vector.broadcast %8 : vector<1x16xf32> to vector<16x16xf32>
    %15 = arith.addf %13, %14 : vector<16x16xf32>
    %cst_9 = arith.constant 0.000000e+00 : f32
    %16 = vector.broadcast %cst_9 : f32 to vector<16x16xf32>
    %17 = arith.maximumf %15, %16 : vector<16x16xf32>
    %18 = arith.truncf %17 : vector<16x16xf32> to vector<16x16xbf16>
    %cst_10 = arith.constant dense<0.000000e+00> : vector<16x64xf32>
    %19 = tpu.matmul %18, %3, %cst_10 {dimension_numbers = #tpu.dot_dimension_numbers<[1], [0], [0], [1], [0, 0, 1, 1], [], []>} : vector<16x16xbf16>, vector<16x64xbf16>, vector<16x64xf32> -> vector<16x64xf32>
    %20 = vector.broadcast %9 : vector<1x64xf32> to vector<16x64xf32>
    %21 = arith.addf %19, %20 : vector<16x64xf32>
    %22 = vector.shape_cast %21 : vector<16x64xf32> to vector<2x8x64xf32>
    %cst_11 = arith.constant 0.000000e+00 : f32
    %23 = vector.broadcast %cst_11 : f32 to vector<2x16xf32>
    %cst_12 = arith.constant 0.000000e+00 : f32
    %24 = vector.broadcast %cst_12 : f32 to vector<2x16xf32>
    %25 = vector.extract_strided_slice %22 {offsets = [0, 0, 0], sizes = [2, 1, 64], strides = [1, 1, 1]} : vector<2x8x64xf32> to vector<2x1x64xf32>
    %26 = vector.shape_cast %25 : vector<2x1x64xf32> to vector<2x64xf32>
    %27 = arith.truncf %23 : vector<2x16xf32> to vector<2x16xbf16>
    %cst_13 = arith.constant dense<0.000000e+00> : vector<2x64xf32>
    %28 = tpu.matmul %27, %5, %cst_13 {dimension_numbers = #tpu.dot_dimension_numbers<[1], [0], [0], [1], [0, 0, 1, 1], [], []>} : vector<2x16xbf16>, vector<16x64xbf16>, vector<2x64xf32> -> vector<2x64xf32>
    %29 = arith.addf %26, %28 : vector<2x64xf32>
    %30 = arith.negf %29 : vector<2x64xf32>
    %31 = math.exp %30 : vector<2x64xf32>
    %cst_14 = arith.constant 1.000000e+00 : f32
    %32 = vector.broadcast %cst_14 : f32 to vector<2x64xf32>
    %33 = arith.addf %32, %31 : vector<2x64xf32>
    %34 = arith.divf %32, %33 : vector<2x64xf32>
    %35 = vector.extract_strided_slice %34 {offsets = [0, 0], sizes = [2, 16], strides = [1, 1]} : vector<2x64xf32> to vector<2x16xf32>
    %36 = vector.extract_strided_slice %34 {offsets = [0, 16], sizes = [2, 16], strides = [1, 1]} : vector<2x64xf32> to vector<2x16xf32>
    %37 = vector.extract_strided_slice %34 {offsets = [0, 32], sizes = [2, 16], strides = [1, 1]} : vector<2x64xf32> to vector<2x16xf32>
    %cst_15 = arith.constant 2.000000e+00 : f32
    %38 = vector.broadcast %cst_15 : f32 to vector<2x16xf32>
    %39 = arith.mulf %38, %37 : vector<2x16xf32>
    %cst_16 = arith.constant 1.000000e+00 : f32
    %40 = vector.broadcast %cst_16 : f32 to vector<2x16xf32>
    %41 = arith.subf %39, %40 : vector<2x16xf32>
    %42 = vector.extract_strided_slice %34 {offsets = [0, 48], sizes = [2, 16], strides = [1, 1]} : vector<2x64xf32> to vector<2x16xf32>
    %43 = arith.mulf %36, %24 : vector<2x16xf32>
    %44 = arith.mulf %35, %41 : vector<2x16xf32>
    %45 = arith.addf %43, %44 : vector<2x16xf32>
    %46 = math.tanh %45 : vector<2x16xf32>
    %47 = arith.mulf %42, %46 : vector<2x16xf32>
    %48 = vector.extract_strided_slice %22 {offsets = [0, 1, 0], sizes = [2, 1, 64], strides = [1, 1, 1]} : vector<2x8x64xf32> to vector<2x1x64xf32>
    %49 = vector.shape_cast %48 : vector<2x1x64xf32> to vector<2x64xf32>
    %50 = arith.truncf %47 : vector<2x16xf32> to vector<2x16xbf16>
    %cst_17 = arith.constant dense<0.000000e+00> : vector<2x64xf32>
    %51 = tpu.matmul %50, %5, %cst_17 {dimension_numbers = #tpu.dot_dimension_numbers<[1], [0], [0], [1], [0, 0, 1, 1], [], []>} : vector<2x16xbf16>, vector<16x64xbf16>, vector<2x64xf32> -> vector<2x64xf32>
    %52 = arith.addf %49, %51 : vector<2x64xf32>
    %53 = arith.negf %52 : vector<2x64xf32>
    %54 = math.exp %53 : vector<2x64xf32>
    %cst_18 = arith.constant 1.000000e+00 : f32
    %55 = vector.broadcast %cst_18 : f32 to vector<2x64xf32>
    %56 = arith.addf %55, %54 : vector<2x64xf32>
    %57 = arith.divf %55, %56 : vector<2x64xf32>
    %58 = vector.extract_strided_slice %57 {offsets = [0, 0], sizes = [2, 16], strides = [1, 1]} : vector<2x64xf32> to vector<2x16xf32>
    %59 = vector.extract_strided_slice %57 {offsets = [0, 16], sizes = [2, 16], strides = [1, 1]} : vector<2x64xf32> to vector<2x16xf32>
    %60 = vector.extract_strided_slice %57 {offsets = [0, 32], sizes = [2, 16], strides = [1, 1]} : vector<2x64xf32> to vector<2x16xf32>
    %cst_19 = arith.constant 2.000000e+00 : f32
    %61 = vector.broadcast %cst_19 : f32 to vector<2x16xf32>
    %62 = arith.mulf %61, %60 : vector<2x16xf32>
    %cst_20 = arith.constant 1.000000e+00 : f32
    %63 = vector.broadcast %cst_20 : f32 to vector<2x16xf32>
    %64 = arith.subf %62, %63 : vector<2x16xf32>
    %65 = vector.extract_strided_slice %57 {offsets = [0, 48], sizes = [2, 16], strides = [1, 1]} : vector<2x64xf32> to vector<2x16xf32>
    %66 = arith.mulf %59, %45 : vector<2x16xf32>
    %67 = arith.mulf %58, %64 : vector<2x16xf32>
    %68 = arith.addf %66, %67 : vector<2x16xf32>
    %69 = math.tanh %68 : vector<2x16xf32>
    %70 = arith.mulf %65, %69 : vector<2x16xf32>
    %71 = vector.extract_strided_slice %22 {offsets = [0, 2, 0], sizes = [2, 1, 64], strides = [1, 1, 1]} : vector<2x8x64xf32> to vector<2x1x64xf32>
    %72 = vector.shape_cast %71 : vector<2x1x64xf32> to vector<2x64xf32>
    %73 = arith.truncf %70 : vector<2x16xf32> to vector<2x16xbf16>
    %cst_21 = arith.constant dense<0.000000e+00> : vector<2x64xf32>
    %74 = tpu.matmul %73, %5, %cst_21 {dimension_numbers = #tpu.dot_dimension_numbers<[1], [0], [0], [1], [0, 0, 1, 1], [], []>} : vector<2x16xbf16>, vector<16x64xbf16>, vector<2x64xf32> -> vector<2x64xf32>
    %75 = arith.addf %72, %74 : vector<2x64xf32>
    %76 = arith.negf %75 : vector<2x64xf32>
    %77 = math.exp %76 : vector<2x64xf32>
    %cst_22 = arith.constant 1.000000e+00 : f32
    %78 = vector.broadcast %cst_22 : f32 to vector<2x64xf32>
    %79 = arith.addf %78, %77 : vector<2x64xf32>
    %80 = arith.divf %78, %79 : vector<2x64xf32>
    %81 = vector.extract_strided_slice %80 {offsets = [0, 0], sizes = [2, 16], strides = [1, 1]} : vector<2x64xf32> to vector<2x16xf32>
    %82 = vector.extract_strided_slice %80 {offsets = [0, 16], sizes = [2, 16], strides = [1, 1]} : vector<2x64xf32> to vector<2x16xf32>
    %83 = vector.extract_strided_slice %80 {offsets = [0, 32], sizes = [2, 16], strides = [1, 1]} : vector<2x64xf32> to vector<2x16xf32>
    %cst_23 = arith.constant 2.000000e+00 : f32
    %84 = vector.broadcast %cst_23 : f32 to vector<2x16xf32>
    %85 = arith.mulf %84, %83 : vector<2x16xf32>
    %cst_24 = arith.constant 1.000000e+00 : f32
    %86 = vector.broadcast %cst_24 : f32 to vector<2x16xf32>
    %87 = arith.subf %85, %86 : vector<2x16xf32>
    %88 = vector.extract_strided_slice %80 {offsets = [0, 48], sizes = [2, 16], strides = [1, 1]} : vector<2x64xf32> to vector<2x16xf32>
    %89 = arith.mulf %82, %68 : vector<2x16xf32>
    %90 = arith.mulf %81, %87 : vector<2x16xf32>
    %91 = arith.addf %89, %90 : vector<2x16xf32>
    %92 = math.tanh %91 : vector<2x16xf32>
    %93 = arith.mulf %88, %92 : vector<2x16xf32>
    %94 = vector.extract_strided_slice %22 {offsets = [0, 3, 0], sizes = [2, 1, 64], strides = [1, 1, 1]} : vector<2x8x64xf32> to vector<2x1x64xf32>
    %95 = vector.shape_cast %94 : vector<2x1x64xf32> to vector<2x64xf32>
    %96 = arith.truncf %93 : vector<2x16xf32> to vector<2x16xbf16>
    %cst_25 = arith.constant dense<0.000000e+00> : vector<2x64xf32>
    %97 = tpu.matmul %96, %5, %cst_25 {dimension_numbers = #tpu.dot_dimension_numbers<[1], [0], [0], [1], [0, 0, 1, 1], [], []>} : vector<2x16xbf16>, vector<16x64xbf16>, vector<2x64xf32> -> vector<2x64xf32>
    %98 = arith.addf %95, %97 : vector<2x64xf32>
    %99 = arith.negf %98 : vector<2x64xf32>
    %100 = math.exp %99 : vector<2x64xf32>
    %cst_26 = arith.constant 1.000000e+00 : f32
    %101 = vector.broadcast %cst_26 : f32 to vector<2x64xf32>
    %102 = arith.addf %101, %100 : vector<2x64xf32>
    %103 = arith.divf %101, %102 : vector<2x64xf32>
    %104 = vector.extract_strided_slice %103 {offsets = [0, 0], sizes = [2, 16], strides = [1, 1]} : vector<2x64xf32> to vector<2x16xf32>
    %105 = vector.extract_strided_slice %103 {offsets = [0, 16], sizes = [2, 16], strides = [1, 1]} : vector<2x64xf32> to vector<2x16xf32>
    %106 = vector.extract_strided_slice %103 {offsets = [0, 32], sizes = [2, 16], strides = [1, 1]} : vector<2x64xf32> to vector<2x16xf32>
    %cst_27 = arith.constant 2.000000e+00 : f32
    %107 = vector.broadcast %cst_27 : f32 to vector<2x16xf32>
    %108 = arith.mulf %107, %106 : vector<2x16xf32>
    %cst_28 = arith.constant 1.000000e+00 : f32
    %109 = vector.broadcast %cst_28 : f32 to vector<2x16xf32>
    %110 = arith.subf %108, %109 : vector<2x16xf32>
    %111 = vector.extract_strided_slice %103 {offsets = [0, 48], sizes = [2, 16], strides = [1, 1]} : vector<2x64xf32> to vector<2x16xf32>
    %112 = arith.mulf %105, %91 : vector<2x16xf32>
    %113 = arith.mulf %104, %110 : vector<2x16xf32>
    %114 = arith.addf %112, %113 : vector<2x16xf32>
    %115 = math.tanh %114 : vector<2x16xf32>
    %116 = arith.mulf %111, %115 : vector<2x16xf32>
    %117 = vector.extract_strided_slice %22 {offsets = [0, 4, 0], sizes = [2, 1, 64], strides = [1, 1, 1]} : vector<2x8x64xf32> to vector<2x1x64xf32>
    %118 = vector.shape_cast %117 : vector<2x1x64xf32> to vector<2x64xf32>
    %119 = arith.truncf %116 : vector<2x16xf32> to vector<2x16xbf16>
    %cst_29 = arith.constant dense<0.000000e+00> : vector<2x64xf32>
    %120 = tpu.matmul %119, %5, %cst_29 {dimension_numbers = #tpu.dot_dimension_numbers<[1], [0], [0], [1], [0, 0, 1, 1], [], []>} : vector<2x16xbf16>, vector<16x64xbf16>, vector<2x64xf32> -> vector<2x64xf32>
    %121 = arith.addf %118, %120 : vector<2x64xf32>
    %122 = arith.negf %121 : vector<2x64xf32>
    %123 = math.exp %122 : vector<2x64xf32>
    %cst_30 = arith.constant 1.000000e+00 : f32
    %124 = vector.broadcast %cst_30 : f32 to vector<2x64xf32>
    %125 = arith.addf %124, %123 : vector<2x64xf32>
    %126 = arith.divf %124, %125 : vector<2x64xf32>
    %127 = vector.extract_strided_slice %126 {offsets = [0, 0], sizes = [2, 16], strides = [1, 1]} : vector<2x64xf32> to vector<2x16xf32>
    %128 = vector.extract_strided_slice %126 {offsets = [0, 16], sizes = [2, 16], strides = [1, 1]} : vector<2x64xf32> to vector<2x16xf32>
    %129 = vector.extract_strided_slice %126 {offsets = [0, 32], sizes = [2, 16], strides = [1, 1]} : vector<2x64xf32> to vector<2x16xf32>
    %cst_31 = arith.constant 2.000000e+00 : f32
    %130 = vector.broadcast %cst_31 : f32 to vector<2x16xf32>
    %131 = arith.mulf %130, %129 : vector<2x16xf32>
    %cst_32 = arith.constant 1.000000e+00 : f32
    %132 = vector.broadcast %cst_32 : f32 to vector<2x16xf32>
    %133 = arith.subf %131, %132 : vector<2x16xf32>
    %134 = vector.extract_strided_slice %126 {offsets = [0, 48], sizes = [2, 16], strides = [1, 1]} : vector<2x64xf32> to vector<2x16xf32>
    %135 = arith.mulf %128, %114 : vector<2x16xf32>
    %136 = arith.mulf %127, %133 : vector<2x16xf32>
    %137 = arith.addf %135, %136 : vector<2x16xf32>
    %138 = math.tanh %137 : vector<2x16xf32>
    %139 = arith.mulf %134, %138 : vector<2x16xf32>
    %140 = vector.extract_strided_slice %22 {offsets = [0, 5, 0], sizes = [2, 1, 64], strides = [1, 1, 1]} : vector<2x8x64xf32> to vector<2x1x64xf32>
    %141 = vector.shape_cast %140 : vector<2x1x64xf32> to vector<2x64xf32>
    %142 = arith.truncf %139 : vector<2x16xf32> to vector<2x16xbf16>
    %cst_33 = arith.constant dense<0.000000e+00> : vector<2x64xf32>
    %143 = tpu.matmul %142, %5, %cst_33 {dimension_numbers = #tpu.dot_dimension_numbers<[1], [0], [0], [1], [0, 0, 1, 1], [], []>} : vector<2x16xbf16>, vector<16x64xbf16>, vector<2x64xf32> -> vector<2x64xf32>
    %144 = arith.addf %141, %143 : vector<2x64xf32>
    %145 = arith.negf %144 : vector<2x64xf32>
    %146 = math.exp %145 : vector<2x64xf32>
    %cst_34 = arith.constant 1.000000e+00 : f32
    %147 = vector.broadcast %cst_34 : f32 to vector<2x64xf32>
    %148 = arith.addf %147, %146 : vector<2x64xf32>
    %149 = arith.divf %147, %148 : vector<2x64xf32>
    %150 = vector.extract_strided_slice %149 {offsets = [0, 0], sizes = [2, 16], strides = [1, 1]} : vector<2x64xf32> to vector<2x16xf32>
    %151 = vector.extract_strided_slice %149 {offsets = [0, 16], sizes = [2, 16], strides = [1, 1]} : vector<2x64xf32> to vector<2x16xf32>
    %152 = vector.extract_strided_slice %149 {offsets = [0, 32], sizes = [2, 16], strides = [1, 1]} : vector<2x64xf32> to vector<2x16xf32>
    %cst_35 = arith.constant 2.000000e+00 : f32
    %153 = vector.broadcast %cst_35 : f32 to vector<2x16xf32>
    %154 = arith.mulf %153, %152 : vector<2x16xf32>
    %cst_36 = arith.constant 1.000000e+00 : f32
    %155 = vector.broadcast %cst_36 : f32 to vector<2x16xf32>
    %156 = arith.subf %154, %155 : vector<2x16xf32>
    %157 = vector.extract_strided_slice %149 {offsets = [0, 48], sizes = [2, 16], strides = [1, 1]} : vector<2x64xf32> to vector<2x16xf32>
    %158 = arith.mulf %151, %137 : vector<2x16xf32>
    %159 = arith.mulf %150, %156 : vector<2x16xf32>
    %160 = arith.addf %158, %159 : vector<2x16xf32>
    %161 = math.tanh %160 : vector<2x16xf32>
    %162 = arith.mulf %157, %161 : vector<2x16xf32>
    %163 = vector.extract_strided_slice %22 {offsets = [0, 6, 0], sizes = [2, 1, 64], strides = [1, 1, 1]} : vector<2x8x64xf32> to vector<2x1x64xf32>
    %164 = vector.shape_cast %163 : vector<2x1x64xf32> to vector<2x64xf32>
    %165 = arith.truncf %162 : vector<2x16xf32> to vector<2x16xbf16>
    %cst_37 = arith.constant dense<0.000000e+00> : vector<2x64xf32>
    %166 = tpu.matmul %165, %5, %cst_37 {dimension_numbers = #tpu.dot_dimension_numbers<[1], [0], [0], [1], [0, 0, 1, 1], [], []>} : vector<2x16xbf16>, vector<16x64xbf16>, vector<2x64xf32> -> vector<2x64xf32>
    %167 = arith.addf %164, %166 : vector<2x64xf32>
    %168 = arith.negf %167 : vector<2x64xf32>
    %169 = math.exp %168 : vector<2x64xf32>
    %cst_38 = arith.constant 1.000000e+00 : f32
    %170 = vector.broadcast %cst_38 : f32 to vector<2x64xf32>
    %171 = arith.addf %170, %169 : vector<2x64xf32>
    %172 = arith.divf %170, %171 : vector<2x64xf32>
    %173 = vector.extract_strided_slice %172 {offsets = [0, 0], sizes = [2, 16], strides = [1, 1]} : vector<2x64xf32> to vector<2x16xf32>
    %174 = vector.extract_strided_slice %172 {offsets = [0, 16], sizes = [2, 16], strides = [1, 1]} : vector<2x64xf32> to vector<2x16xf32>
    %175 = vector.extract_strided_slice %172 {offsets = [0, 32], sizes = [2, 16], strides = [1, 1]} : vector<2x64xf32> to vector<2x16xf32>
    %cst_39 = arith.constant 2.000000e+00 : f32
    %176 = vector.broadcast %cst_39 : f32 to vector<2x16xf32>
    %177 = arith.mulf %176, %175 : vector<2x16xf32>
    %cst_40 = arith.constant 1.000000e+00 : f32
    %178 = vector.broadcast %cst_40 : f32 to vector<2x16xf32>
    %179 = arith.subf %177, %178 : vector<2x16xf32>
    %180 = vector.extract_strided_slice %172 {offsets = [0, 48], sizes = [2, 16], strides = [1, 1]} : vector<2x64xf32> to vector<2x16xf32>
    %181 = arith.mulf %174, %160 : vector<2x16xf32>
    %182 = arith.mulf %173, %179 : vector<2x16xf32>
    %183 = arith.addf %181, %182 : vector<2x16xf32>
    %184 = math.tanh %183 : vector<2x16xf32>
    %185 = arith.mulf %180, %184 : vector<2x16xf32>
    %186 = vector.extract_strided_slice %22 {offsets = [0, 7, 0], sizes = [2, 1, 64], strides = [1, 1, 1]} : vector<2x8x64xf32> to vector<2x1x64xf32>
    %187 = vector.shape_cast %186 : vector<2x1x64xf32> to vector<2x64xf32>
    %188 = arith.truncf %185 : vector<2x16xf32> to vector<2x16xbf16>
    %cst_41 = arith.constant dense<0.000000e+00> : vector<2x64xf32>
    %189 = tpu.matmul %188, %5, %cst_41 {dimension_numbers = #tpu.dot_dimension_numbers<[1], [0], [0], [1], [0, 0, 1, 1], [], []>} : vector<2x16xbf16>, vector<16x64xbf16>, vector<2x64xf32> -> vector<2x64xf32>
    %190 = arith.addf %187, %189 : vector<2x64xf32>
    %191 = arith.negf %190 : vector<2x64xf32>
    %192 = math.exp %191 : vector<2x64xf32>
    %cst_42 = arith.constant 1.000000e+00 : f32
    %193 = vector.broadcast %cst_42 : f32 to vector<2x64xf32>
    %194 = arith.addf %193, %192 : vector<2x64xf32>
    %195 = arith.divf %193, %194 : vector<2x64xf32>
    %196 = vector.extract_strided_slice %195 {offsets = [0, 0], sizes = [2, 16], strides = [1, 1]} : vector<2x64xf32> to vector<2x16xf32>
    %197 = vector.extract_strided_slice %195 {offsets = [0, 16], sizes = [2, 16], strides = [1, 1]} : vector<2x64xf32> to vector<2x16xf32>
    %198 = vector.extract_strided_slice %195 {offsets = [0, 32], sizes = [2, 16], strides = [1, 1]} : vector<2x64xf32> to vector<2x16xf32>
    %cst_43 = arith.constant 2.000000e+00 : f32
    %199 = vector.broadcast %cst_43 : f32 to vector<2x16xf32>
    %200 = arith.mulf %199, %198 : vector<2x16xf32>
    %cst_44 = arith.constant 1.000000e+00 : f32
    %201 = vector.broadcast %cst_44 : f32 to vector<2x16xf32>
    %202 = arith.subf %200, %201 : vector<2x16xf32>
    %203 = vector.extract_strided_slice %195 {offsets = [0, 48], sizes = [2, 16], strides = [1, 1]} : vector<2x64xf32> to vector<2x16xf32>
    %204 = arith.mulf %197, %183 : vector<2x16xf32>
    %205 = arith.mulf %196, %202 : vector<2x16xf32>
    %206 = arith.addf %204, %205 : vector<2x16xf32>
    %207 = math.tanh %206 : vector<2x16xf32>
    %208 = arith.mulf %203, %207 : vector<2x16xf32>
    %cst_45 = arith.constant 0.000000e+00 : f32
    %209 = vector.broadcast %cst_45 : f32 to vector<2x16xf32>
    %210 = arith.maximumf %208, %209 : vector<2x16xf32>
    %211 = arith.truncf %210 : vector<2x16xf32> to vector<2x16xbf16>
    %cst_46 = arith.constant dense<0.000000e+00> : vector<2x16xf32>
    %212 = tpu.matmul %211, %7, %cst_46 {dimension_numbers = #tpu.dot_dimension_numbers<[1], [0], [0], [1], [0, 0, 1, 1], [], []>} : vector<2x16xbf16>, vector<16x16xbf16>, vector<2x16xf32> -> vector<2x16xf32>
    %213 = vector.broadcast %10 : vector<1x16xf32> to vector<2x16xf32>
    %214 = arith.addf %212, %213 : vector<2x16xf32>
    %c0_47 = arith.constant 0 : index
    %c0_48 = arith.constant 0 : index
    %215 = vector.load %arg2[%c0_47, %c0_48] : memref<2x16xf32, #tpu.memory_space<vmem>>, vector<2x16xf32>
    tpu.vector_store %arg2[%c0_47, %c0_48], %214 {strides = array<i32>} : memref<2x16xf32, #tpu.memory_space<vmem>>, vector<2x16xf32>,
    return
  }
}

</mosaic_0001>

<llo_original>
// kernel: pollution_forward.1
$region0: #{pollution_forward.1}
  #allocation0 [shape = 'u32[]', space=smem, size = 0x4, offset = 0x4, fixed_abs, tag = 'smem constant byte address 0x4 - core index']
  #allocation1 [shape = 'u32[144,128]{1,0:T(1,128)}', space=vmem, size = 0x12000, scoped, tag = 'internal scratch']
  %s0 = inlined_call_operand.hbm [shape: f32[16,16], index: 0, kind: input, shape index: {}]
  %s1 = inlined_call_operand.hbm [shape: f32[72,128], index: 1, kind: input, shape index: {}]
  %s2 = inlined_call_operand.hbm [shape: f32[2,16], index: 2, kind: output, shape index: {}]
  %s3 = sld [smem:[#allocation0]]
  $region26: #{pollution_forward.1} parent=0
    _
  %s5 = ssub.s32 1, %s3
  %s6 = scalar_select 0, %s5, %s3
  $region1: #{pollution_forward.1} parent=0
    #allocation2 [shape = 'u8[8192]{0}', space=vmem, size = 0x2000, scoped, tag = 'input window, operand 0, single buffered']
    #allocation3 [shape = 's32[1]{0}', space=sflag, size = 0x4, scoped, tag = 'scoped memory for pollution_forward.1']
    #allocation4 [shape = 's32[1]{0}', space=sflag, size = 0x4, scoped, tag = 'scoped memory for pollution_forward.1']
    #allocation5 [shape = 'u8[36864]{0}', space=vmem, size = 0x9000, scoped, tag = 'input window, operand 1, single buffered']
    #allocation6 [shape = 's32[1]{0}', space=sflag, size = 0x4, scoped, tag = 'scoped memory for pollution_forward.1']
    #allocation7 [shape = 'u8[1024]{0}', space=vmem, size = 0x400, scoped, tag = 'output window, operand 0, single buffered']
    %7 = vsyncpa [#allocation3], 0
    %8 = vsyncpa [#allocation6], 0
    %9 = vsyncpa [#allocation4], 0
    // Predicated region
    $region2: #{pollution_forward.1} parent=1 // pred_check
      _
    $region3: #{pollution_forward.1} parent=1 // pred_check_branch
      %11 = sbr.rel (0) target = $region5
    $region4: #{pollution_forward.1} parent=1 // pred_region
      %s13 = ssub.s32 256, 256
      %14 = vsyncadd [#allocation3], %s13
      %s15 = sshll.u32 [#allocation2], 4
      %s16 = int_to_ptr.vmem [resolvable:$true] %s15
      %21 = dma.hbm_to_vmem [thread:$0]  %s0, 256, %s16, [#allocation3], 128, 128, 8
    $region5: #{pollution_forward.1} parent=1 // pred_fallthru
      _
    // Predicated region
    $region6: #{pollution_forward.1} parent=1 // pred_check
      _
    $region7: #{pollution_forward.1} parent=1 // pred_check_branch
      %23 = sbr.rel (0) target = $region9
    $region8: #{pollution_forward.1} parent=1 // pred_region
      %s25 = ssub.s32 1152, 1152
      %26 = vsyncadd [#allocation6], %s25
      %s27 = sshll.u32 [#allocation5], 4
      %s28 = int_to_ptr.vmem [resolvable:$true] %s27
      %33 = dma.hbm_to_vmem [thread:$0]  %s1, 1152, %s28, [#allocation6], 128, 128, 8
    $region9: #{pollution_forward.1} parent=1 // pred_fallthru
      _
    // Predicated region
    $region10: #{pollution_forward.1} parent=1 // pred_check
      _
    $region11: #{pollution_forward.1} parent=1 // pred_check_branch
      %35 = sbr.rel (0) target = $region13
    $region12: #{pollution_forward.1} parent=1 // pred_region
      %36 = dma.done [#allocation3], 256
    $region13: #{pollution_forward.1} parent=1 // pred_fallthru
      _
    // Predicated region
    $region14: #{pollution_forward.1} parent=1 // pred_check
      _
    $region15: #{pollution_forward.1} parent=1 // pred_check_branch
      %38 = sbr.rel (0) target = $region17
    $region16: #{pollution_forward.1} parent=1 // pred_region
      %39 = dma.done [#allocation6], 1152
    $region17: #{pollution_forward.1} parent=1 // pred_fallthru
      _
    %v41 = vld [vmem:[#allocation5] sm:$0xff]
    %v42 = vld [vmem:[#allocation5 + $0x8] sm:$0xff]
    %v43 = vpack.c.bf16 %v42, %v41
    %v44 = vld [vmem:[#allocation5 + $0x10] sm:$0xff]
    %v45 = vld [vmem:[#allocation5 + $0x18] sm:$0xff]
    %v46 = vpack.c.bf16 %v45, %v44
    %v47 = vld [vmem:[#allocation5 + $0x20] sm:$0xff]
    %v48 = vld [vmem:[#allocation5 + $0x28] sm:$0xff]
    %v49 = vpack.c.bf16 %v48, %v47
    %v50 = vld [vmem:[#allocation5 + $0x30] sm:$0xff]
    %v51 = vld [vmem:[#allocation5 + $0x38] sm:$0xff]
    %v52 = vpack.c.bf16 %v51, %v50
    %v53 = vld [vmem:[#allocation5 + $0x40] sm:$0x1]
    %v54 = vld [vmem:[#allocation5 + $0x41] sm:$0x1]
    %v55 = vld [vmem:[#allocation5 + $0x42] sm:$0x1]
    %v56 = vld [vmem:[#allocation2] sm:$0xff]
    %v57 = vld [vmem:[#allocation2 + $0x8] sm:$0xff]
    %v58 = vpack.c.bf16 %v57, %v56
    %v59 = vlaneseq
    %v60 = vshrl.u32 %v59, 7
    %v61 = vsub.s32 0, %v60
    %v62 = vrot.slane %v53, %v61
    %vm63 = vcmask 130048
    %v65 = vsel %vm63, %v58, 0
    %67 = vmatprep.subr.bf16.mxu0 0
    %68 = vmatpush1.bf16.msra.mxu0 0
    %69 = vmatprep.subr.bf16.mxu0 0
    %70 = vmatpush1.bf16.msra.mxu0 0
    %71 = vmatprep.subr.bf16.mxu0 0
    %72 = vmatpush1.bf16.msra.mxu0 0
    %73 = vmatprep.subr.bf16.mxu0 0
    %74 = vmatpush1.bf16.msra.mxu0 0
    %75 = vmatprep.subr.bf16.mxu0 0
    %76 = vmatpush1.bf16.msra.mxu0 0
    %77 = vmatprep.subr.bf16.mxu0 0
    %78 = vmatpush1.bf16.msra.mxu0 0
    %79 = vmatprep.subr.bf16.mxu0 0
    %80 = vmatpush1.bf16.msra.mxu0 0
    %81 = vmatprep.subr.bf16.mxu0 0
    %82 = vmatpush1.bf16.msra.mxu0 %v43
    %83 = vmatprep.subr.bf16.mxu0 0
    %84 = vmatpush2.bf16.msra.mxu0 0
    %85 = vmatprep.subr.bf16.mxu0 0
    %86 = vmatpush2.bf16.msra.mxu0 0
    %87 = vmatprep.subr.bf16.mxu0 0
    %88 = vmatpush2.bf16.msra.mxu0 0
    %89 = vmatprep.subr.bf16.mxu0 0
    %90 = vmatpush2.bf16.msra.mxu0 0
    %91 = vmatprep.subr.bf16.mxu0 0
    %92 = vmatpush2.bf16.msra.mxu0 0
    %93 = vmatprep.subr.bf16.mxu0 0
    %94 = vmatpush2.bf16.msra.mxu0 0
    %95 = vmatprep.subr.bf16.mxu0 0
    %96 = vmatpush2.bf16.msra.mxu0 0
    %97 = vmatprep.subr.bf16.mxu0 0
    %98 = vmatpush2.bf16.msra.mxu0 0
    %99 = vmatprep.mubr.bf16.mxu0 0
    %100 = vmatmul.mubr.bf16.gmra.mxu0 %v65
    %v101 = vpop.f32.mrf.mxu0
    %v102 = vadd.f32 %v62, %v101
    %v103 = vpop.f32.mrf.mxu0
    %v104 = vpop.f32.mrf.mxu0
    %v105 = vadd.f32 %v62, %v104
    %v106 = vpop.f32.mrf.mxu0
    %107 = vdwg.mxu0
    %v108 = vmax.f32 %v102, 0.0
    %v109 = vmax.f32 %v105, 0.0
    %v110 = vpack.c.bf16 %v109, %v108
    %v111 = vlaneseq
    %v112 = vshrl.u32 %v111, 7
    %v113 = vsub.s32 0, %v112
    %v114 = vrot.slane %v54, %v113
    %v116 = vsel %vm63, %v110, 0
    %118 = vmatprep.subr.bf16.mxu0 0
    %119 = vmatpush1.bf16.msra.mxu0 0
    %120 = vmatprep.subr.bf16.mxu0 0
    %121 = vmatpush1.bf16.msra.mxu0 0
    %122 = vmatprep.subr.bf16.mxu0 0
    %123 = vmatpush1.bf16.msra.mxu0 0
    %124 = vmatprep.subr.bf16.mxu0 0
    %125 = vmatpush1.bf16.msra.mxu0 0
    %126 = vmatprep.subr.bf16.mxu0 0
    %127 = vmatpush1.bf16.msra.mxu0 0
    %128 = vmatprep.subr.bf16.mxu0 0
    %129 = vmatpush1.bf16.msra.mxu0 0
    %130 = vmatprep.subr.bf16.mxu0 0
    %131 = vmatpush1.bf16.msra.mxu0 0
    %132 = vmatprep.subr.bf16.mxu0 0
    %133 = vmatpush1.bf16.msra.mxu0 %v46
    %134 = vmatprep.subr.bf16.mxu0 0
    %135 = vmatpush2.bf16.msra.mxu0 0
    %136 = vmatprep.subr.bf16.mxu0 0
    %137 = vmatpush2.bf16.msra.mxu0 0
    %138 = vmatprep.subr.bf16.mxu0 0
    %139 = vmatpush2.bf16.msra.mxu0 0
    %140 = vmatprep.subr.bf16.mxu0 0
    %141 = vmatpush2.bf16.msra.mxu0 0
    %142 = vmatprep.subr.bf16.mxu0 0
    %143 = vmatpush2.bf16.msra.mxu0 0
    %144 = vmatprep.subr.bf16.mxu0 0
    %145 = vmatpush2.bf16.msra.mxu0 0
    %146 = vmatprep.subr.bf16.mxu0 0
    %147 = vmatpush2.bf16.msra.mxu0 0
    %148 = vmatprep.subr.bf16.mxu0 0
    %149 = vmatpush2.bf16.msra.mxu0 0
    %150 = vmatprep.mubr.bf16.mxu0 0
    %151 = vmatmul.mubr.bf16.gmra.mxu0 %v116
    %v152 = vpop.f32.mrf.mxu0
    %v153 = vadd.f32 %v114, %v152
    %v154 = vpop.f32.mrf.mxu0
    %v155 = vpop.f32.mrf.mxu0
    %v156 = vadd.f32 %v114, %v155
    %v157 = vpop.f32.mrf.mxu0
    %158 = vdwg.mxu0
    %v160 = vsel %vm63, 0, 0
    %162 = vmatprep.subr.bf16.mxu0 0
    %163 = vmatpush1.bf16.msra.mxu0 0
    %164 = vmatprep.subr.bf16.mxu0 0
    %165 = vmatpush1.bf16.msra.mxu0 0
    %166 = vmatprep.subr.bf16.mxu0 0
    %167 = vmatpush1.bf16.msra.mxu0 0
    %168 = vmatprep.subr.bf16.mxu0 0
    %169 = vmatpush1.bf16.msra.mxu0 0
    %170 = vmatprep.subr.bf16.mxu0 0
    %171 = vmatpush1.bf16.msra.mxu0 0
    %172 = vmatprep.subr.bf16.mxu0 0
    %173 = vmatpush1.bf16.msra.mxu0 0
    %174 = vmatprep.subr.bf16.mxu0 0
    %175 = vmatpush1.bf16.msra.mxu0 0
    %176 = vmatprep.subr.bf16.mxu0 0
    %177 = vmatpush1.bf16.msra.mxu0 %v49
    %178 = vmatprep.subr.bf16.mxu0 0
    %179 = vmatpush2.bf16.msra.mxu0 0
    %180 = vmatprep.subr.bf16.mxu0 0
    %181 = vmatpush2.bf16.msra.mxu0 0
    %182 = vmatprep.subr.bf16.mxu0 0
    %183 = vmatpush2.bf16.msra.mxu0 0
    %184 = vmatprep.subr.bf16.mxu0 0
    %185 = vmatpush2.bf16.msra.mxu0 0
    %186 = vmatprep.subr.bf16.mxu0 0
    %187 = vmatpush2.bf16.msra.mxu0 0
    %188 = vmatprep.subr.bf16.mxu0 0
    %189 = vmatpush2.bf16.msra.mxu0 0
    %190 = vmatprep.subr.bf16.mxu0 0
    %191 = vmatpush2.bf16.msra.mxu0 0
    %192 = vmatprep.subr.bf16.mxu0 0
    %193 = vmatpush2.bf16.msra.mxu0 0
    %194 = vmatprep.mubr.bf16.mxu0 0
    %195 = vmatmul.mubr.bf16.gmra.mxu0 %v160
    %v196 = vpop.f32.mrf.mxu0
    %v197 = vadd.f32 0.0, %v196
    %v198 = vpop.f32.mrf.mxu0
    %v199 = vpop.f32.mrf.mxu0
    %v200 = vpop.f32.mrf.mxu0
    %201 = vdwg.mxu0
    %v203 = vrot.slane %v197, 1
    %v206 = vadd.f32 %v153, %v197
    %v207 = vadd.f32 %v156, %v203
    %v208 = vxor.u32 %v206, 2147483648
    %v209 = vxor.u32 %v207, 2147483648
    %v210 = vmul.f32 %v208, 1.442695
    %v211 = vpow.pop %v210
    %v212 = vmul.f32 %v209, 1.442695
    %v213 = vpow.pop %v212
    %v214 = vadd.f32 %v211, 1.0
    %v215 = vadd.f32 %v213, 1.0
    %v216 = vrcp.pop %v214
    %v217 = vmul.f32 1.0, %v216
    %v218 = vrcp.pop %v215
    %v219 = vmul.f32 1.0, %v218
    %v220 = vmul.f32 %v217, 2.0
    %v221 = vmul.f32 %v219, 2.0
    %v222 = vsub.f32 %v220, 1.0
    %v223 = vsub.f32 %v221, 1.0
    %v224 = vmul.f32 %v217, 0.0
    %v225 = vmul.f32 %v219, 0.0
    %228 = vrot.lane.b32.xlu0 %v222, 96
    %v229 = vpop.permute.xlu0 %228
    %230 = vrot.lane.b32.xlu0 %v223, 96
    %v231 = vpop.permute.xlu0 %230
    %v234 = vmul.f32 %v217, %v229
    %v235 = vmul.f32 %v219, %v231
    %238 = vrot.lane.b32.xlu0 %v234, 16
    %v239 = vpop.permute.xlu0 %238
    %240 = vrot.lane.b32.xlu0 %v235, 16
    %v241 = vpop.permute.xlu0 %240
    %v244 = vadd.f32 %v224, %v239
    %v245 = vadd.f32 %v225, %v241
    %v246 = vtanh.pop %v244
    %v247 = vtanh.pop %v245
    %250 = vrot.lane.b32.xlu0 %v246, 32
    %v251 = vpop.permute.xlu0 %250
    %252 = vrot.lane.b32.xlu0 %v247, 32
    %v253 = vpop.permute.xlu0 %252
    %v256 = vmul.f32 %v217, %v251
    %v257 = vmul.f32 %v219, %v253
    %v258 = vpack.c.bf16 %v256, %v256
    %v259 = vpack.c.bf16 %v257, %v257
    %v262 = vunpack.c.l.b16 %v258
    %v263 = vunpack.c.l.b16 %v259
    %v264 = vrot.slane %v263, 7
    %vm265 = vcmask 1041409
    %v266 = vsel %vm265, %v264, %v262
    %v267 = vpack.c.b16 %v266, %v266
    %268 = vrot.lane.b32.xlu0 %v267, 80
    %v269 = vpop.permute.xlu0 %268
    %v271 = vsel %vm63, %v269, 0
    %273 = vmatprep.subr.bf16.mxu0 0
    %274 = vmatpush1.bf16.msra.mxu0 0
    %275 = vmatprep.subr.bf16.mxu0 0
    %276 = vmatpush1.bf16.msra.mxu0 0
    %277 = vmatprep.subr.bf16.mxu0 0
    %278 = vmatpush1.bf16.msra.mxu0 0
    %279 = vmatprep.subr.bf16.mxu0 0
    %280 = vmatpush1.bf16.msra.mxu0 0
    %281 = vmatprep.subr.bf16.mxu0 0
    %282 = vmatpush1.bf16.msra.mxu0 0
    %283 = vmatprep.subr.bf16.mxu0 0
    %284 = vmatpush1.bf16.msra.mxu0 0
    %285 = vmatprep.subr.bf16.mxu0 0
    %286 = vmatpush1.bf16.msra.mxu0 0
    %287 = vmatprep.subr.bf16.mxu0 0
    %288 = vmatpush1.bf16.msra.mxu0 %v49
    %289 = vmatprep.subr.bf16.mxu0 0
    %290 = vmatpush2.bf16.msra.mxu0 0
    %291 = vmatprep.subr.bf16.mxu0 0
    %292 = vmatpush2.bf16.msra.mxu0 0
    %293 = vmatprep.subr.bf16.mxu0 0
    %294 = vmatpush2.bf16.msra.mxu0 0
    %295 = vmatprep.subr.bf16.mxu0 0
    %296 = vmatpush2.bf16.msra.mxu0 0
    %297 = vmatprep.subr.bf16.mxu0 0
    %298 = vmatpush2.bf16.msra.mxu0 0
    %299 = vmatprep.subr.bf16.mxu0 0
    %300 = vmatpush2.bf16.msra.mxu0 0
    %301 = vmatprep.subr.bf16.mxu0 0
    %302 = vmatpush2.bf16.msra.mxu0 0
    %303 = vmatprep.subr.bf16.mxu0 0
    %304 = vmatpush2.bf16.msra.mxu0 0
    %305 = vmatprep.mubr.bf16.mxu0 0
    %306 = vmatmul.mubr.bf16.gmra.mxu0 %v271
    %v307 = vpop.f32.mrf.mxu0
    %v308 = vadd.f32 0.0, %v307
    %v309 = vpop.f32.mrf.mxu0
    %v310 = vpop.f32.mrf.mxu0
    %v311 = vpop.f32.mrf.mxu0
    %312 = vdwg.mxu0
    %v314 = vrot.slane %v308, 7
    %v317 = vadd.f32 %v153, %v314
    %v318 = vadd.f32 %v156, %v308
    %v319 = vxor.u32 %v317, 2147483648
    %v320 = vxor.u32 %v318, 2147483648
    %v321 = vmul.f32 %v319, 1.442695
    %v322 = vpow.pop %v321
    %v323 = vmul.f32 %v320, 1.442695
    %v324 = vpow.pop %v323
    %v325 = vadd.f32 %v322, 1.0
    %v326 = vadd.f32 %v324, 1.0
    %v327 = vrcp.pop %v325
    %v328 = vmul.f32 1.0, %v327
    %v329 = vrcp.pop %v326
    %v330 = vmul.f32 1.0, %v329
    %v331 = vmul.f32 %v328, 2.0
    %v332 = vmul.f32 %v330, 2.0
    %v333 = vsub.f32 %v331, 1.0
    %v334 = vsub.f32 %v332, 1.0
    %v337 = vrot.slane %v244, 7
    %v338 = vrot.slane %v245, 7
    %v341 = vmul.f32 %v328, %v337
    %v342 = vmul.f32 %v330, %v338
    %345 = vrot.lane.b32.xlu0 %v333, 96
    %v346 = vpop.permute.xlu0 %345
    %347 = vrot.lane.b32.xlu0 %v334, 96
    %v348 = vpop.permute.xlu0 %347
    %v351 = vmul.f32 %v328, %v346
    %v352 = vmul.f32 %v330, %v348
    %355 = vrot.lane.b32.xlu0 %v351, 16
    %v356 = vpop.permute.xlu0 %355
    %357 = vrot.lane.b32.xlu0 %v352, 16
    %v358 = vpop.permute.xlu0 %357
    %v361 = vadd.f32 %v341, %v356
    %v362 = vadd.f32 %v342, %v358
    %v363 = vtanh.pop %v361
    %v364 = vtanh.pop %v362
    %367 = vrot.lane.b32.xlu0 %v363, 32
    %v368 = vpop.permute.xlu0 %367
    %369 = vrot.lane.b32.xlu0 %v364, 32
    %v370 = vpop.permute.xlu0 %369
    %v373 = vmul.f32 %v328, %v368
    %v374 = vmul.f32 %v330, %v370
    %v375 = vpack.c.bf16 %v373, %v373
    %v376 = vpack.c.bf16 %v374, %v374
    %v379 = vunpack.c.l.b16 %v375
    %v380 = vunpack.c.l.b16 %v376
    %v381 = vrot.slane %v379, 1
    %v382 = vsel %vm265, %v380, %v381
    %v383 = vpack.c.b16 %v382, %v382
    %384 = vrot.lane.b32.xlu0 %v383, 80
    %v385 = vpop.permute.xlu0 %384
    %v387 = vsel %vm63, %v385, 0
    %389 = vmatprep.subr.bf16.mxu0 0
    %390 = vmatpush1.bf16.msra.mxu0 0
    %391 = vmatprep.subr.bf16.mxu0 0
    %392 = vmatpush1.bf16.msra.mxu0 0
    %393 = vmatprep.subr.bf16.mxu0 0
    %394 = vmatpush1.bf16.msra.mxu0 0
    %395 = vmatprep.subr.bf16.mxu0 0
    %396 = vmatpush1.bf16.msra.mxu0 0
    %397 = vmatprep.subr.bf16.mxu0 0
    %398 = vmatpush1.bf16.msra.mxu0 0
    %399 = vmatprep.subr.bf16.mxu0 0
    %400 = vmatpush1.bf16.msra.mxu0 0
    %401 = vmatprep.subr.bf16.mxu0 0
    %402 = vmatpush1.bf16.msra.mxu0 0
    %403 = vmatprep.subr.bf16.mxu0 0
    %404 = vmatpush1.bf16.msra.mxu0 %v49
    %405 = vmatprep.subr.bf16.mxu0 0
    %406 = vmatpush2.bf16.msra.mxu0 0
    %407 = vmatprep.subr.bf16.mxu0 0
    %408 = vmatpush2.bf16.msra.mxu0 0
    %409 = vmatprep.subr.bf16.mxu0 0
    %410 = vmatpush2.bf16.msra.mxu0 0
    %411 = vmatprep.subr.bf16.mxu0 0
    %412 = vmatpush2.bf16.msra.mxu0 0
    %413 = vmatprep.subr.bf16.mxu0 0
    %414 = vmatpush2.bf16.msra.mxu0 0
    %415 = vmatprep.subr.bf16.mxu0 0
    %416 = vmatpush2.bf16.msra.mxu0 0
    %417 = vmatprep.subr.bf16.mxu0 0
    %418 = vmatpush2.bf16.msra.mxu0 0
    %419 = vmatprep.subr.bf16.mxu0 0
    %420 = vmatpush2.bf16.msra.mxu0 0
    %421 = vmatprep.mubr.bf16.mxu0 0
    %422 = vmatmul.mubr.bf16.gmra.mxu0 %v387
    %v423 = vpop.f32.mrf.mxu0
    %v424 = vadd.f32 0.0, %v423
    %v425 = vpop.f32.mrf.mxu0
    %v426 = vpop.f32.mrf.mxu0
    %v427 = vpop.f32.mrf.mxu0
    %428 = vdwg.mxu0
    %v430 = vrot.slane %v424, 6
    %v431 = vrot.slane %v424, 7
    %v434 = vadd.f32 %v153, %v430
    %v435 = vadd.f32 %v156, %v431
    %v436 = vxor.u32 %v434, 2147483648
    %v437 = vxor.u32 %v435, 2147483648
    %v438 = vmul.f32 %v436, 1.442695
    %v439 = vpow.pop %v438
    %v440 = vmul.f32 %v437, 1.442695
    %v441 = vpow.pop %v440
    %v442 = vadd.f32 %v439, 1.0
    %v443 = vadd.f32 %v441, 1.0
    %v444 = vrcp.pop %v442
    %v445 = vmul.f32 1.0, %v444
    %v446 = vrcp.pop %v443
    %v447 = vmul.f32 1.0, %v446
    %v448 = vmul.f32 %v445, 2.0
    %v449 = vmul.f32 %v447, 2.0
    %v450 = vsub.f32 %v448, 1.0
    %v451 = vsub.f32 %v449, 1.0
    %v454 = vrot.slane %v361, 7
    %v455 = vrot.slane %v362, 7
    %v458 = vmul.f32 %v445, %v454
    %v459 = vmul.f32 %v447, %v455
    %462 = vrot.lane.b32.xlu0 %v450, 96
    %v463 = vpop.permute.xlu0 %462
    %464 = vrot.lane.b32.xlu0 %v451, 96
    %v465 = vpop.permute.xlu0 %464
    %v468 = vmul.f32 %v445, %v463
    %v469 = vmul.f32 %v447, %v465
    %472 = vrot.lane.b32.xlu0 %v468, 16
    %v473 = vpop.permute.xlu0 %472
    %474 = vrot.lane.b32.xlu0 %v469, 16
    %v475 = vpop.permute.xlu0 %474
    %v478 = vadd.f32 %v458, %v473
    %v479 = vadd.f32 %v459, %v475
    %v480 = vtanh.pop %v478
    %v481 = vtanh.pop %v479
    %484 = vrot.lane.b32.xlu0 %v480, 32
    %v485 = vpop.permute.xlu0 %484
    %486 = vrot.lane.b32.xlu0 %v481, 32
    %v487 = vpop.permute.xlu0 %486
    %v490 = vmul.f32 %v445, %v485
    %v491 = vmul.f32 %v447, %v487
    %v492 = vpack.c.bf16 %v490, %v490
    %v493 = vpack.c.bf16 %v491, %v491
    %v496 = vunpack.c.l.b16 %v492
    %v497 = vunpack.c.l.b16 %v493
    %v498 = vrot.slane %v496, 2
    %v499 = vrot.slane %v497, 1
    %v500 = vsel %vm265, %v499, %v498
    %v501 = vpack.c.b16 %v500, %v500
    %502 = vrot.lane.b32.xlu0 %v501, 80
    %v503 = vpop.permute.xlu0 %502
    %v505 = vsel %vm63, %v503, 0
    %507 = vmatprep.subr.bf16.mxu0 0
    %508 = vmatpush1.bf16.msra.mxu0 0
    %509 = vmatprep.subr.bf16.mxu0 0
    %510 = vmatpush1.bf16.msra.mxu0 0
    %511 = vmatprep.subr.bf16.mxu0 0
    %512 = vmatpush1.bf16.msra.mxu0 0
    %513 = vmatprep.subr.bf16.mxu0 0
    %514 = vmatpush1.bf16.msra.mxu0 0
    %515 = vmatprep.subr.bf16.mxu0 0
    %516 = vmatpush1.bf16.msra.mxu0 0
    %517 = vmatprep.subr.bf16.mxu0 0
    %518 = vmatpush1.bf16.msra.mxu0 0
    %519 = vmatprep.subr.bf16.mxu0 0
    %520 = vmatpush1.bf16.msra.mxu0 0
    %521 = vmatprep.subr.bf16.mxu0 0
    %522 = vmatpush1.bf16.msra.mxu0 %v49
    %523 = vmatprep.subr.bf16.mxu0 0
    %524 = vmatpush2.bf16.msra.mxu0 0
    %525 = vmatprep.subr.bf16.mxu0 0
    %526 = vmatpush2.bf16.msra.mxu0 0
    %527 = vmatprep.subr.bf16.mxu0 0
    %528 = vmatpush2.bf16.msra.mxu0 0
    %529 = vmatprep.subr.bf16.mxu0 0
    %530 = vmatpush2.bf16.msra.mxu0 0
    %531 = vmatprep.subr.bf16.mxu0 0
    %532 = vmatpush2.bf16.msra.mxu0 0
    %533 = vmatprep.subr.bf16.mxu0 0
    %534 = vmatpush2.bf16.msra.mxu0 0
    %535 = vmatprep.subr.bf16.mxu0 0
    %536 = vmatpush2.bf16.msra.mxu0 0
    %537 = vmatprep.subr.bf16.mxu0 0
    %538 = vmatpush2.bf16.msra.mxu0 0
    %539 = vmatprep.mubr.bf16.mxu0 0
    %540 = vmatmul.mubr.bf16.gmra.mxu0 %v505
    %v541 = vpop.f32.mrf.mxu0
    %v542 = vadd.f32 0.0, %v541
    %v543 = vpop.f32.mrf.mxu0
    %v544 = vpop.f32.mrf.mxu0
    %v545 = vpop.f32.mrf.mxu0
    %546 = vdwg.mxu0
    %v548 = vrot.slane %v542, 5
    %v549 = vrot.slane %v542, 6
    %v552 = vadd.f32 %v153, %v548
    %v553 = vadd.f32 %v156, %v549
    %v554 = vxor.u32 %v552, 2147483648
    %v555 = vxor.u32 %v553, 2147483648
    %v556 = vmul.f32 %v554, 1.442695
    %v557 = vpow.pop %v556
    %v558 = vmul.f32 %v555, 1.442695
    %v559 = vpow.pop %v558
    %v560 = vadd.f32 %v557, 1.0
    %v561 = vadd.f32 %v559, 1.0
    %v562 = vrcp.pop %v560
    %v563 = vmul.f32 1.0, %v562
    %v564 = vrcp.pop %v561
    %v565 = vmul.f32 1.0, %v564
    %v566 = vmul.f32 %v563, 2.0
    %v567 = vmul.f32 %v565, 2.0
    %v568 = vsub.f32 %v566, 1.0
    %v569 = vsub.f32 %v567, 1.0
    %v572 = vrot.slane %v478, 7
    %v573 = vrot.slane %v479, 7
    %v576 = vmul.f32 %v563, %v572
    %v577 = vmul.f32 %v565, %v573
    %580 = vrot.lane.b32.xlu0 %v568, 96
    %v581 = vpop.permute.xlu0 %580
    %582 = vrot.lane.b32.xlu0 %v569, 96
    %v583 = vpop.permute.xlu0 %582
    %v586 = vmul.f32 %v563, %v581
    %v587 = vmul.f32 %v565, %v583
    %590 = vrot.lane.b32.xlu0 %v586, 16
    %v591 = vpop.permute.xlu0 %590
    %592 = vrot.lane.b32.xlu0 %v587, 16
    %v593 = vpop.permute.xlu0 %592
    %v596 = vadd.f32 %v576, %v591
    %v597 = vadd.f32 %v577, %v593
    %v598 = vtanh.pop %v596
    %v599 = vtanh.pop %v597
    %602 = vrot.lane.b32.xlu0 %v598, 32
    %v603 = vpop.permute.xlu0 %602
    %604 = vrot.lane.b32.xlu0 %v599, 32
    %v605 = vpop.permute.xlu0 %604
    %v608 = vmul.f32 %v563, %v603
    %v609 = vmul.f32 %v565, %v605
    %v610 = vpack.c.bf16 %v608, %v608
    %v611 = vpack.c.bf16 %v609, %v609
    %v614 = vunpack.c.l.b16 %v610
    %v615 = vunpack.c.l.b16 %v611
    %v616 = vrot.slane %v614, 3
    %v617 = vrot.slane %v615, 2
    %v618 = vsel %vm265, %v617, %v616
    %v619 = vpack.c.b16 %v618, %v618
    %620 = vrot.lane.b32.xlu0 %v619, 80
    %v621 = vpop.permute.xlu0 %620
    %v623 = vsel %vm63, %v621, 0
    %625 = vmatprep.subr.bf16.mxu0 0
    %626 = vmatpush1.bf16.msra.mxu0 0
    %627 = vmatprep.subr.bf16.mxu0 0
    %628 = vmatpush1.bf16.msra.mxu0 0
    %629 = vmatprep.subr.bf16.mxu0 0
    %630 = vmatpush1.bf16.msra.mxu0 0
    %631 = vmatprep.subr.bf16.mxu0 0
    %632 = vmatpush1.bf16.msra.mxu0 0
    %633 = vmatprep.subr.bf16.mxu0 0
    %634 = vmatpush1.bf16.msra.mxu0 0
    %635 = vmatprep.subr.bf16.mxu0 0
    %636 = vmatpush1.bf16.msra.mxu0 0
    %637 = vmatprep.subr.bf16.mxu0 0
    %638 = vmatpush1.bf16.msra.mxu0 0
    %639 = vmatprep.subr.bf16.mxu0 0
    %640 = vmatpush1.bf16.msra.mxu0 %v49
    %641 = vmatprep.subr.bf16.mxu0 0
    %642 = vmatpush2.bf16.msra.mxu0 0
    %643 = vmatprep.subr.bf16.mxu0 0
    %644 = vmatpush2.bf16.msra.mxu0 0
    %645 = vmatprep.subr.bf16.mxu0 0
    %646 = vmatpush2.bf16.msra.mxu0 0
    %647 = vmatprep.subr.bf16.mxu0 0
    %648 = vmatpush2.bf16.msra.mxu0 0
    %649 = vmatprep.subr.bf16.mxu0 0
    %650 = vmatpush2.bf16.msra.mxu0 0
    %651 = vmatprep.subr.bf16.mxu0 0
    %652 = vmatpush2.bf16.msra.mxu0 0
    %653 = vmatprep.subr.bf16.mxu0 0
    %654 = vmatpush2.bf16.msra.mxu0 0
    %655 = vmatprep.subr.bf16.mxu0 0
    %656 = vmatpush2.bf16.msra.mxu0 0
    %657 = vmatprep.mubr.bf16.mxu0 0
    %658 = vmatmul.mubr.bf16.gmra.mxu0 %v623
    %v659 = vpop.f32.mrf.mxu0
    %v660 = vadd.f32 0.0, %v659
    %v661 = vpop.f32.mrf.mxu0
    %v662 = vpop.f32.mrf.mxu0
    %v663 = vpop.f32.mrf.mxu0
    %664 = vdwg.mxu0
    %v666 = vrot.slane %v660, 4
    %v667 = vrot.slane %v660, 5
    %v670 = vadd.f32 %v153, %v666
    %v671 = vadd.f32 %v156, %v667
    %v672 = vxor.u32 %v670, 2147483648
    %v673 = vxor.u32 %v671, 2147483648
    %v674 = vmul.f32 %v672, 1.442695
    %v675 = vpow.pop %v674
    %v676 = vmul.f32 %v673, 1.442695
    %v677 = vpow.pop %v676
    %v678 = vadd.f32 %v675, 1.0
    %v679 = vadd.f32 %v677, 1.0
    %v680 = vrcp.pop %v678
    %v681 = vmul.f32 1.0, %v680
    %v682 = vrcp.pop %v679
    %v683 = vmul.f32 1.0, %v682
    %v684 = vmul.f32 %v681, 2.0
    %v685 = vmul.f32 %v683, 2.0
    %v686 = vsub.f32 %v684, 1.0
    %v687 = vsub.f32 %v685, 1.0
    %v690 = vrot.slane %v596, 7
    %v691 = vrot.slane %v597, 7
    %v694 = vmul.f32 %v681, %v690
    %v695 = vmul.f32 %v683, %v691
    %698 = vrot.lane.b32.xlu0 %v686, 96
    %v699 = vpop.permute.xlu0 %698
    %700 = vrot.lane.b32.xlu0 %v687, 96
    %v701 = vpop.permute.xlu0 %700
    %v704 = vmul.f32 %v681, %v699
    %v705 = vmul.f32 %v683, %v701
    %708 = vrot.lane.b32.xlu0 %v704, 16
    %v709 = vpop.permute.xlu0 %708
    %710 = vrot.lane.b32.xlu0 %v705, 16
    %v711 = vpop.permute.xlu0 %710
    %v714 = vadd.f32 %v694, %v709
    %v715 = vadd.f32 %v695, %v711
    %v716 = vtanh.pop %v714
    %v717 = vtanh.pop %v715
    %720 = vrot.lane.b32.xlu0 %v716, 32
    %v721 = vpop.permute.xlu0 %720
    %722 = vrot.lane.b32.xlu0 %v717, 32
    %v723 = vpop.permute.xlu0 %722
    %v726 = vmul.f32 %v681, %v721
    %v727 = vmul.f32 %v683, %v723
    %v728 = vpack.c.bf16 %v726, %v726
    %v729 = vpack.c.bf16 %v727, %v727
    %v732 = vunpack.c.l.b16 %v728
    %v733 = vunpack.c.l.b16 %v729
    %v734 = vrot.slane %v732, 4
    %v735 = vrot.slane %v733, 3
    %v736 = vsel %vm265, %v735, %v734
    %v737 = vpack.c.b16 %v736, %v736
    %738 = vrot.lane.b32.xlu0 %v737, 80
    %v739 = vpop.permute.xlu0 %738
    %v741 = vsel %vm63, %v739, 0
    %743 = vmatprep.subr.bf16.mxu0 0
    %744 = vmatpush1.bf16.msra.mxu0 0
    %745 = vmatprep.subr.bf16.mxu0 0
    %746 = vmatpush1.bf16.msra.mxu0 0
    %747 = vmatprep.subr.bf16.mxu0 0
    %748 = vmatpush1.bf16.msra.mxu0 0
    %749 = vmatprep.subr.bf16.mxu0 0
    %750 = vmatpush1.bf16.msra.mxu0 0
    %751 = vmatprep.subr.bf16.mxu0 0
    %752 = vmatpush1.bf16.msra.mxu0 0
    %753 = vmatprep.subr.bf16.mxu0 0
    %754 = vmatpush1.bf16.msra.mxu0 0
    %755 = vmatprep.subr.bf16.mxu0 0
    %756 = vmatpush1.bf16.msra.mxu0 0
    %757 = vmatprep.subr.bf16.mxu0 0
    %758 = vmatpush1.bf16.msra.mxu0 %v49
    %759 = vmatprep.subr.bf16.mxu0 0
    %760 = vmatpush2.bf16.msra.mxu0 0
    %761 = vmatprep.subr.bf16.mxu0 0
    %762 = vmatpush2.bf16.msra.mxu0 0
    %763 = vmatprep.subr.bf16.mxu0 0
    %764 = vmatpush2.bf16.msra.mxu0 0
    %765 = vmatprep.subr.bf16.mxu0 0
    %766 = vmatpush2.bf16.msra.mxu0 0
    %767 = vmatprep.subr.bf16.mxu0 0
    %768 = vmatpush2.bf16.msra.mxu0 0
    %769 = vmatprep.subr.bf16.mxu0 0
    %770 = vmatpush2.bf16.msra.mxu0 0
    %771 = vmatprep.subr.bf16.mxu0 0
    %772 = vmatpush2.bf16.msra.mxu0 0
    %773 = vmatprep.subr.bf16.mxu0 0
    %774 = vmatpush2.bf16.msra.mxu0 0
    %775 = vmatprep.mubr.bf16.mxu0 0
    %776 = vmatmul.mubr.bf16.gmra.mxu0 %v741
    %v777 = vpop.f32.mrf.mxu0
    %v778 = vadd.f32 0.0, %v777
    %v779 = vpop.f32.mrf.mxu0
    %v780 = vpop.f32.mrf.mxu0
    %v781 = vpop.f32.mrf.mxu0
    %782 = vdwg.mxu0
    %v784 = vrot.slane %v778, 3
    %v785 = vrot.slane %v778, 4
    %v788 = vadd.f32 %v153, %v784
    %v789 = vadd.f32 %v156, %v785
    %v790 = vxor.u32 %v788, 2147483648
    %v791 = vxor.u32 %v789, 2147483648
    %v792 = vmul.f32 %v790, 1.442695
    %v793 = vpow.pop %v792
    %v794 = vmul.f32 %v791, 1.442695
    %v795 = vpow.pop %v794
    %v796 = vadd.f32 %v793, 1.0
    %v797 = vadd.f32 %v795, 1.0
    %v798 = vrcp.pop %v796
    %v799 = vmul.f32 1.0, %v798
    %v800 = vrcp.pop %v797
    %v801 = vmul.f32 1.0, %v800
    %v802 = vmul.f32 %v799, 2.0
    %v803 = vmul.f32 %v801, 2.0
    %v804 = vsub.f32 %v802, 1.0
    %v805 = vsub.f32 %v803, 1.0
    %v808 = vrot.slane %v714, 7
    %v809 = vrot.slane %v715, 7
    %v812 = vmul.f32 %v799, %v808
    %v813 = vmul.f32 %v801, %v809
    %816 = vrot.lane.b32.xlu0 %v804, 96
    %v817 = vpop.permute.xlu0 %816
    %818 = vrot.lane.b32.xlu0 %v805, 96
    %v819 = vpop.permute.xlu0 %818
    %v822 = vmul.f32 %v799, %v817
    %v823 = vmul.f32 %v801, %v819
    %826 = vrot.lane.b32.xlu0 %v822, 16
    %v827 = vpop.permute.xlu0 %826
    %828 = vrot.lane.b32.xlu0 %v823, 16
    %v829 = vpop.permute.xlu0 %828
    %v832 = vadd.f32 %v812, %v827
    %v833 = vadd.f32 %v813, %v829
    %v834 = vtanh.pop %v832
    %v835 = vtanh.pop %v833
    %838 = vrot.lane.b32.xlu0 %v834, 32
    %v839 = vpop.permute.xlu0 %838
    %840 = vrot.lane.b32.xlu0 %v835, 32
    %v841 = vpop.permute.xlu0 %840
    %v844 = vmul.f32 %v799, %v839
    %v845 = vmul.f32 %v801, %v841
    %v846 = vpack.c.bf16 %v844, %v844
    %v847 = vpack.c.bf16 %v845, %v845
    %v850 = vunpack.c.l.b16 %v846
    %v851 = vunpack.c.l.b16 %v847
    %v852 = vrot.slane %v850, 5
    %v853 = vrot.slane %v851, 4
    %v854 = vsel %vm265, %v853, %v852
    %v855 = vpack.c.b16 %v854, %v854
    %856 = vrot.lane.b32.xlu0 %v855, 80
    %v857 = vpop.permute.xlu0 %856
    %v859 = vsel %vm63, %v857, 0
    %861 = vmatprep.subr.bf16.mxu0 0
    %862 = vmatpush1.bf16.msra.mxu0 0
    %863 = vmatprep.subr.bf16.mxu0 0
    %864 = vmatpush1.bf16.msra.mxu0 0
    %865 = vmatprep.subr.bf16.mxu0 0
    %866 = vmatpush1.bf16.msra.mxu0 0
    %867 = vmatprep.subr.bf16.mxu0 0
    %868 = vmatpush1.bf16.msra.mxu0 0
    %869 = vmatprep.subr.bf16.mxu0 0
    %870 = vmatpush1.bf16.msra.mxu0 0
    %871 = vmatprep.subr.bf16.mxu0 0
    %872 = vmatpush1.bf16.msra.mxu0 0
    %873 = vmatprep.subr.bf16.mxu0 0
    %874 = vmatpush1.bf16.msra.mxu0 0
    %875 = vmatprep.subr.bf16.mxu0 0
    %876 = vmatpush1.bf16.msra.mxu0 %v49
    %877 = vmatprep.subr.bf16.mxu0 0
    %878 = vmatpush2.bf16.msra.mxu0 0
    %879 = vmatprep.subr.bf16.mxu0 0
    %880 = vmatpush2.bf16.msra.mxu0 0
    %881 = vmatprep.subr.bf16.mxu0 0
    %882 = vmatpush2.bf16.msra.mxu0 0
    %883 = vmatprep.subr.bf16.mxu0 0
    %884 = vmatpush2.bf16.msra.mxu0 0
    %885 = vmatprep.subr.bf16.mxu0 0
    %886 = vmatpush2.bf16.msra.mxu0 0
    %887 = vmatprep.subr.bf16.mxu0 0
    %888 = vmatpush2.bf16.msra.mxu0 0
    %889 = vmatprep.subr.bf16.mxu0 0
    %890 = vmatpush2.bf16.msra.mxu0 0
    %891 = vmatprep.subr.bf16.mxu0 0
    %892 = vmatpush2.bf16.msra.mxu0 0
    %893 = vmatprep.mubr.bf16.mxu0 0
    %894 = vmatmul.mubr.bf16.gmra.mxu0 %v859
    %v895 = vpop.f32.mrf.mxu0
    %v896 = vadd.f32 0.0, %v895
    %v897 = vpop.f32.mrf.mxu0
    %v898 = vpop.f32.mrf.mxu0
    %v899 = vpop.f32.mrf.mxu0
    %900 = vdwg.mxu0
    %v902 = vrot.slane %v896, 2
    %v903 = vrot.slane %v896, 3
    %v906 = vadd.f32 %v153, %v902
    %v907 = vadd.f32 %v156, %v903
    %v908 = vxor.u32 %v906, 2147483648
    %v909 = vxor.u32 %v907, 2147483648
    %v910 = vmul.f32 %v908, 1.442695
    %v911 = vpow.pop %v910
    %v912 = vmul.f32 %v909, 1.442695
    %v913 = vpow.pop %v912
    %v914 = vadd.f32 %v911, 1.0
    %v915 = vadd.f32 %v913, 1.0
    %v916 = vrcp.pop %v914
    %v917 = vmul.f32 1.0, %v916
    %v918 = vrcp.pop %v915
    %v919 = vmul.f32 1.0, %v918
    %v920 = vmul.f32 %v917, 2.0
    %v921 = vmul.f32 %v919, 2.0
    %v922 = vsub.f32 %v920, 1.0
    %v923 = vsub.f32 %v921, 1.0
    %v926 = vrot.slane %v832, 7
    %v927 = vrot.slane %v833, 7
    %v930 = vmul.f32 %v917, %v926
    %v931 = vmul.f32 %v919, %v927
    %934 = vrot.lane.b32.xlu0 %v922, 96
    %v935 = vpop.permute.xlu0 %934
    %936 = vrot.lane.b32.xlu0 %v923, 96
    %v937 = vpop.permute.xlu0 %936
    %v940 = vmul.f32 %v917, %v935
    %v941 = vmul.f32 %v919, %v937
    %944 = vrot.lane.b32.xlu0 %v940, 16
    %v945 = vpop.permute.xlu0 %944
    %946 = vrot.lane.b32.xlu0 %v941, 16
    %v947 = vpop.permute.xlu0 %946
    %v950 = vadd.f32 %v930, %v945
    %v951 = vadd.f32 %v931, %v947
    %v952 = vtanh.pop %v950
    %v953 = vtanh.pop %v951
    %956 = vrot.lane.b32.xlu0 %v952, 32
    %v957 = vpop.permute.xlu0 %956
    %958 = vrot.lane.b32.xlu0 %v953, 32
    %v959 = vpop.permute.xlu0 %958
    %v962 = vmul.f32 %v917, %v957
    %v963 = vmul.f32 %v919, %v959
    %v964 = vpack.c.bf16 %v962, %v962
    %v965 = vpack.c.bf16 %v963, %v963
    %v968 = vunpack.c.l.b16 %v964
    %v969 = vunpack.c.l.b16 %v965
    %v970 = vrot.slane %v968, 6
    %v971 = vrot.slane %v969, 5
    %v972 = vsel %vm265, %v971, %v970
    %v973 = vpack.c.b16 %v972, %v972
    %974 = vrot.lane.b32.xlu0 %v973, 80
    %v975 = vpop.permute.xlu0 %974
    %v977 = vsel %vm63, %v975, 0
    %979 = vmatprep.subr.bf16.mxu0 0
    %980 = vmatpush1.bf16.msra.mxu0 0
    %981 = vmatprep.subr.bf16.mxu0 0
    %982 = vmatpush1.bf16.msra.mxu0 0
    %983 = vmatprep.subr.bf16.mxu0 0
    %984 = vmatpush1.bf16.msra.mxu0 0
    %985 = vmatprep.subr.bf16.mxu0 0
    %986 = vmatpush1.bf16.msra.mxu0 0
    %987 = vmatprep.subr.bf16.mxu0 0
    %988 = vmatpush1.bf16.msra.mxu0 0
    %989 = vmatprep.subr.bf16.mxu0 0
    %990 = vmatpush1.bf16.msra.mxu0 0
    %991 = vmatprep.subr.bf16.mxu0 0
    %992 = vmatpush1.bf16.msra.mxu0 0
    %993 = vmatprep.subr.bf16.mxu0 0
    %994 = vmatpush1.bf16.msra.mxu0 %v49
    %995 = vmatprep.subr.bf16.mxu0 0
    %996 = vmatpush2.bf16.msra.mxu0 0
    %997 = vmatprep.subr.bf16.mxu0 0
    %998 = vmatpush2.bf16.msra.mxu0 0
    %999 = vmatprep.subr.bf16.mxu0 0
    %1000 = vmatpush2.bf16.msra.mxu0 0
    %1001 = vmatprep.subr.bf16.mxu0 0
    %1002 = vmatpush2.bf16.msra.mxu0 0
    %1003 = vmatprep.subr.bf16.mxu0 0
    %1004 = vmatpush2.bf16.msra.mxu0 0
    %1005 = vmatprep.subr.bf16.mxu0 0
    %1006 = vmatpush2.bf16.msra.mxu0 0
    %1007 = vmatprep.subr.bf16.mxu0 0
    %1008 = vmatpush2.bf16.msra.mxu0 0
    %1009 = vmatprep.subr.bf16.mxu0 0
    %1010 = vmatpush2.bf16.msra.mxu0 0
    %1011 = vmatprep.mubr.bf16.mxu0 0
    %1012 = vmatmul.mubr.bf16.gmra.mxu0 %v977
    %v1013 = vpop.f32.mrf.mxu0
    %v1014 = vadd.f32 0.0, %v1013
    %v1015 = vpop.f32.mrf.mxu0
    %v1016 = vpop.f32.mrf.mxu0
    %v1017 = vpop.f32.mrf.mxu0
    %1018 = vdwg.mxu0
    %v1020 = vrot.slane %v1014, 1
    %v1021 = vrot.slane %v1014, 2
    %v1024 = vadd.f32 %v153, %v1020
    %v1025 = vadd.f32 %v156, %v1021
    %v1026 = vxor.u32 %v1024, 2147483648
    %v1027 = vxor.u32 %v1025, 2147483648
    %v1028 = vmul.f32 %v1026, 1.442695
    %v1029 = vpow.pop %v1028
    %v1030 = vmul.f32 %v1027, 1.442695
    %v1031 = vpow.pop %v1030
    %v1032 = vadd.f32 %v1029, 1.0
    %v1033 = vadd.f32 %v1031, 1.0
    %v1034 = vrcp.pop %v1032
    %v1035 = vmul.f32 1.0, %v1034
    %v1036 = vrcp.pop %v1033
    %v1037 = vmul.f32 1.0, %v1036
    %v1038 = vmul.f32 %v1035, 2.0
    %v1039 = vmul.f32 %v1037, 2.0
    %v1040 = vsub.f32 %v1038, 1.0
    %v1041 = vsub.f32 %v1039, 1.0
    %v1044 = vrot.slane %v950, 7
    %v1045 = vrot.slane %v951, 7
    %v1048 = vmul.f32 %v1035, %v1044
    %v1049 = vmul.f32 %v1037, %v1045
    %1052 = vrot.lane.b32.xlu0 %v1040, 96
    %v1053 = vpop.permute.xlu0 %1052
    %1054 = vrot.lane.b32.xlu0 %v1041, 96
    %v1055 = vpop.permute.xlu0 %1054
    %v1058 = vmul.f32 %v1035, %v1053
    %v1059 = vmul.f32 %v1037, %v1055
    %1062 = vrot.lane.b32.xlu0 %v1058, 16
    %v1063 = vpop.permute.xlu0 %1062
    %1064 = vrot.lane.b32.xlu0 %v1059, 16
    %v1065 = vpop.permute.xlu0 %1064
    %v1068 = vadd.f32 %v1048, %v1063
    %v1069 = vadd.f32 %v1049, %v1065
    %v1070 = vtanh.pop %v1068
    %v1071 = vtanh.pop %v1069
    %1074 = vrot.lane.b32.xlu0 %v1070, 32
    %v1075 = vpop.permute.xlu0 %1074
    %1076 = vrot.lane.b32.xlu0 %v1071, 32
    %v1077 = vpop.permute.xlu0 %1076
    %v1080 = vmul.f32 %v1035, %v1075
    %v1081 = vmul.f32 %v1037, %v1077
    %v1082 = vmax.f32 %v1080, 0.0
    %v1083 = vmax.f32 %v1081, 0.0
    %v1084 = vpack.c.bf16 %v1082, %v1082
    %v1085 = vpack.c.bf16 %v1083, %v1083
    %v1086 = vlaneseq
    %v1087 = vshrl.u32 %v1086, 7
    %v1088 = vsub.s32 0, %v1087
    %v1089 = vrot.slane %v55, %v1088
    %v1092 = vunpack.c.l.b16 %v1084
    %v1093 = vunpack.c.l.b16 %v1085
    %v1094 = vrot.slane %v1092, 7
    %v1095 = vrot.slane %v1093, 6
    %v1096 = vsel %vm265, %v1095, %v1094
    %v1097 = vpack.c.b16 %v1096, %v1096
    %1098 = vrot.lane.b32.xlu0 %v1097, 80
    %v1099 = vpop.permute.xlu0 %1098
    %v1101 = vsel %vm63, %v1099, 0
    %1103 = vmatprep.subr.bf16.mxu0 0
    %1104 = vmatpush1.bf16.msra.mxu0 0
    %1105 = vmatprep.subr.bf16.mxu0 0
    %1106 = vmatpush1.bf16.msra.mxu0 0
    %1107 = vmatprep.subr.bf16.mxu0 0
    %1108 = vmatpush1.bf16.msra.mxu0 0
    %1109 = vmatprep.subr.bf16.mxu0 0
    %1110 = vmatpush1.bf16.msra.mxu0 0
    %1111 = vmatprep.subr.bf16.mxu0 0
    %1112 = vmatpush1.bf16.msra.mxu0 0
    %1113 = vmatprep.subr.bf16.mxu0 0
    %1114 = vmatpush1.bf16.msra.mxu0 0
    %1115 = vmatprep.subr.bf16.mxu0 0
    %1116 = vmatpush1.bf16.msra.mxu0 0
    %1117 = vmatprep.subr.bf16.mxu0 0
    %1118 = vmatpush1.bf16.msra.mxu0 %v52
    %1119 = vmatprep.subr.bf16.mxu0 0
    %1120 = vmatpush2.bf16.msra.mxu0 0
    %1121 = vmatprep.subr.bf16.mxu0 0
    %1122 = vmatpush2.bf16.msra.mxu0 0
    %1123 = vmatprep.subr.bf16.mxu0 0
    %1124 = vmatpush2.bf16.msra.mxu0 0
    %1125 = vmatprep.subr.bf16.mxu0 0
    %1126 = vmatpush2.bf16.msra.mxu0 0
    %1127 = vmatprep.subr.bf16.mxu0 0
    %1128 = vmatpush2.bf16.msra.mxu0 0
    %1129 = vmatprep.subr.bf16.mxu0 0
    %1130 = vmatpush2.bf16.msra.mxu0 0
    %1131 = vmatprep.subr.bf16.mxu0 0
    %1132 = vmatpush2.bf16.msra.mxu0 0
    %1133 = vmatprep.subr.bf16.mxu0 0
    %1134 = vmatpush2.bf16.msra.mxu0 0
    %1135 = vmatprep.mubr.bf16.mxu0 0
    %1136 = vmatmul.mubr.bf16.gmra.mxu0 %v1101
    %v1137 = vpop.f32.mrf.mxu0
    %v1138 = vadd.f32 %v1089, %v1137
    %v1139 = vpop.f32.mrf.mxu0
    %v1140 = vpop.f32.mrf.mxu0
    %v1141 = vpop.f32.mrf.mxu0
    %1142 = vdwg.mxu0
    %vm1143 = vcmask 123904
    %1144 = vst.msk [vmem:[#allocation7] sm:$0x3] %vm1143, %v1138
    // Predicated region
    $region18: #{pollution_forward.1} parent=1 // pred_check
      _
    $region19: #{pollution_forward.1} parent=1 // pred_check_branch
      %1146 = sbr.rel (0) target = $region21
    $region20: #{pollution_forward.1} parent=1 // pred_region
      %s1148 = ssub.s32 32, 32
      %1149 = vsyncadd [#allocation4], %s1148
      %s1151 = sshll.u32 [#allocation7], 4
      %s1152 = int_to_ptr.vmem [resolvable:$true] %s1151
      %1154 = dma.vmem_to_hbm [thread:$0]  %s1152, 32, %s2, [#allocation4]
    $region21: #{pollution_forward.1} parent=1 // pred_fallthru
      _
    // Predicated region
    $region22: #{pollution_forward.1} parent=1 // pred_check
      _
    $region23: #{pollution_forward.1} parent=1 // pred_check_branch
      %1156 = sbr.rel (0) target = $region25
    $region24: #{pollution_forward.1} parent=1 // pred_region
      %1157 = dma.done [#allocation4], 32
    $region25: #{pollution_forward.1} parent=1 // pred_fallthru
      _
    %1158 = vsyncpa [#allocation3], 1
    %1159 = vsyncpa [#allocation6], 1
    %1160 = vsyncpa [#allocation4], 1

</llo_original>
